<compile_context>
chip_gen: v6e
topology: v6e:2x2x1
jax: 0.10.0
libtpu: 0.0.40
codegen_flags: <defaults>
</compile_context>

<pallas_src>
import jax
import jax.numpy as jnp
from jax.experimental import pallas as pl
from jax.experimental.pallas import tpu as pltpu


def _fused_groupsum_kernel(x_ref, o_ref):
    # x_ref: (1, 2, 6) f32 in VMEM; o_ref: (2, 2) f32 in VMEM.
    #
    # Row-major flatten of (1, 1, 2, 6) into (4, 3) rows is:
    #   row0 = x[0,0,0:3], row1 = x[0,0,3:6], row2 = x[0,1,0:3], row3 = x[0,1,3:6]
    # and the final reshape(1,2,2)+squeeze lays the 4 row-sums out as
    #   out = [[s0, s1], [s2, s3]]
    # i.e. out[:, 0] = sum over lanes 0:3, out[:, 1] = sum over lanes 3:6.
    x = x_ref[0]                                            # (2, 6)
    left = jnp.sum(x[:, 0:3], axis=-1, keepdims=True)       # (2, 1)
    right = jnp.sum(x[:, 3:6], axis=-1, keepdims=True)      # (2, 1)
    col = jax.lax.broadcasted_iota(jnp.int32, (2, 2), 1)    # lane index
    # Pure-VPU assembly of the (2, 2) result (broadcast + select), single store.
    o_ref[...] = jnp.where(col == 0, left, right)


def model_forward(x1):
    # One fused kernel: reads x1 directly, emits the final (2, 2) output.
    return pl.pallas_call(
        _fused_groupsum_kernel,
        out_shape=jax.ShapeDtypeStruct((2, 2), jnp.float32),
        in_specs=[pl.BlockSpec(memory_space=pltpu.MemorySpace.VMEM)],
        out_specs=pl.BlockSpec(memory_space=pltpu.MemorySpace.VMEM),
    )(x1)


if __name__ == "__main__":
    key = jax.random.PRNGKey(0)
    # 12 elements so that reshape(-1, 3) and reshape(1, 2, 2) are both valid.
    x1 = jax.random.normal(key, (1, 2, 6), dtype=jnp.float32)

    out = jax.block_until_ready(model_forward(x1))

    # Reference check in plain JAX (mirrors the original torch graph).
    v1 = jnp.expand_dims(x1, 1)
    v2 = jnp.reshape(v1, (-1, 3))
    v3 = v2 @ jnp.ones((3, 1), jnp.float32)
    ref = jnp.squeeze(jnp.reshape(v3, (1, 2, 2)))
    assert out.shape == (2, 2), out.shape
    assert jnp.allclose(out, ref, atol=1e-5), (out, ref)

    print("KERNEL_OK")
</pallas_src>

<mosaic_0001>
module attributes {stable_mosaic.version = 11 : i64} {
  func.func @_fused_groupsum_kernel(%arg0: memref<1x2x6xf32, #tpu.memory_space<vmem>>, %arg1: memref<2x2xf32, #tpu.memory_space<vmem>>) attributes {dimension_semantics = [], scalar_prefetch = 0 : i64, scratch_operands = 0 : i64, tpu.core_type = #tpu.core_type<tc>} {
    %c0 = arith.constant 0 : index
    %c0_0 = arith.constant 0 : index
    %c0_1 = arith.constant 0 : index
    %0 = vector.load %arg0[%c0, %c0_0, %c0_1] : memref<1x2x6xf32, #tpu.memory_space<vmem>>, vector<1x2x6xf32>
    %1 = vector.shape_cast %0 : vector<1x2x6xf32> to vector<2x6xf32>
    %2 = vector.extract_strided_slice %1 {offsets = [0, 0], sizes = [2, 3], strides = [1, 1]} : vector<2x6xf32> to vector<2x3xf32>
    %cst = arith.constant dense<0.000000e+00> : vector<2xf32>
    %3 = vector.multi_reduction <add>, %2, %cst [1] : vector<2x3xf32> to vector<2xf32>
    %4 = vector.shape_cast %3 : vector<2xf32> to vector<2x1xf32>
    %5 = vector.extract_strided_slice %1 {offsets = [0, 3], sizes = [2, 3], strides = [1, 1]} : vector<2x6xf32> to vector<2x3xf32>
    %cst_2 = arith.constant dense<0.000000e+00> : vector<2xf32>
    %6 = vector.multi_reduction <add>, %5, %cst_2 [1] : vector<2x3xf32> to vector<2xf32>
    %7 = vector.shape_cast %6 : vector<2xf32> to vector<2x1xf32>
    %8 = tpu.iota {dimensions = array<i32: 1>} : vector<2x2xi32>
    %c0_i32 = arith.constant 0 : i32
    %9 = vector.broadcast %c0_i32 : i32 to vector<2x2xi32>
    %10 = arith.cmpi eq, %8, %9 : vector<2x2xi32>
    %11 = vector.shape_cast %4 : vector<2x1xf32> to vector<2x1xf32>
    %12 = vector.broadcast %11 : vector<2x1xf32> to vector<2x2xf32>
    %13 = vector.shape_cast %7 : vector<2x1xf32> to vector<2x1xf32>
    %14 = vector.broadcast %13 : vector<2x1xf32> to vector<2x2xf32>
    %15 = arith.select %10, %12, %14 : vector<2x2xi1>, vector<2x2xf32>
    %c0_3 = arith.constant 0 : index
    %c0_4 = arith.constant 0 : index
    %16 = vector.load %arg1[%c0_3, %c0_4] : memref<2x2xf32, #tpu.memory_space<vmem>>, vector<2x2xf32>
    tpu.vector_store %arg1[%c0_3, %c0_4], %15 {strides = array<i32>} : memref<2x2xf32, #tpu.memory_space<vmem>>, vector<2x2xf32>,
    return
  }
}

</mosaic_0001>

<llo_original>
// kernel: tpu_custom_call.1
$region0: #{tpu_custom_call.1}
  #allocation0 [shape = 'u32[]', space=smem, size = 0x4, offset = 0x4, fixed_abs, tag = 'smem constant byte address 0x4 - core index']
  #allocation1 [shape = 'u32[144,128]{1,0:T(1,128)}', space=vmem, size = 0x12000, scoped, tag = 'internal scratch']
  %s0 = inlined_call_operand.hbm [shape: f32[1,2,6], index: 0, kind: input, shape index: {}]
  %s1 = inlined_call_operand.hbm [shape: f32[2,2], index: 1, kind: output, shape index: {}]
  %s2 = sld [smem:[#allocation0]]
  $region18: #{tpu_custom_call.1} parent=0
    _
  %s4 = ssub.s32 1, %s2
  %s5 = scalar_select 0, %s4, %s2
  $region1: #{tpu_custom_call.1} parent=0
    #allocation2 [shape = 'u8[1024]{0}', space=vmem, size = 0x400, scoped, tag = 'input window, operand 0, single buffered']
    #allocation3 [shape = 's32[1]{0}', space=sflag, size = 0x4, scoped, tag = 'scoped memory for tpu_custom_call.1']
    #allocation4 [shape = 's32[1]{0}', space=sflag, size = 0x4, scoped, tag = 'scoped memory for tpu_custom_call.1']
    #allocation5 [shape = 'u8[1024]{0}', space=vmem, size = 0x400, scoped, tag = 'output window, operand 0, single buffered']
    %6 = vsyncpa [#allocation3], 0
    %7 = vsyncpa [#allocation4], 0
    // Predicated region
    $region2: #{tpu_custom_call.1} parent=1 // pred_check
      _
    $region3: #{tpu_custom_call.1} parent=1 // pred_check_branch
      %9 = sbr.rel (0) target = $region5
    $region4: #{tpu_custom_call.1} parent=1 // pred_region
      %s11 = ssub.s32 32, 32
      %12 = vsyncadd [#allocation3], %s11
      %s14 = sshll.u32 [#allocation2], 4
      %s15 = int_to_ptr.vmem [resolvable:$true] %s14
      %17 = dma.hbm_to_vmem [thread:$0]  %s0, 32, %s15, [#allocation3]
    $region5: #{tpu_custom_call.1} parent=1 // pred_fallthru
      _
    // Predicated region
    $region6: #{tpu_custom_call.1} parent=1 // pred_check
      _
    $region7: #{tpu_custom_call.1} parent=1 // pred_check_branch
      %19 = sbr.rel (0) target = $region9
    $region8: #{tpu_custom_call.1} parent=1 // pred_region
      %20 = dma.done [#allocation3], 32
    $region9: #{tpu_custom_call.1} parent=1 // pred_fallthru
      _
    %v21 = vld [vmem:[#allocation2] sm:$0x3]
    %vm22 = vcmask 17408
    %v23 = vsel %vm22, %v21, 0.0
    %24 = vadd.xlane.f32.xlu0 %v23
    %v25 = vpop.xlane.xlu0 %24
    %27 = vrot.lane.b32.xlu0 %v21, 125
    %v28 = vpop.permute.xlu0 %27
    %v30 = vsel %vm22, %v28, 0.0
    %31 = vadd.xlane.f32.xlu0 %v30
    %v32 = vpop.xlane.xlu0 %31
    %v33 = vlaneseq
    %v34 = vand.u32 %v33, 127
    %vm35 = vcmp.eq.s32.totalorder %v34, 0
    %v36 = vsel %vm35, %v25, %v32
    %vm37 = vcmask 9216
    %38 = vst.msk [vmem:[#allocation5] sm:$0x3] %vm37, %v36
    // Predicated region
    $region10: #{tpu_custom_call.1} parent=1 // pred_check
      _
    $region11: #{tpu_custom_call.1} parent=1 // pred_check_branch
      %40 = sbr.rel (0) target = $region13
    $region12: #{tpu_custom_call.1} parent=1 // pred_region
      %s42 = ssub.s32 32, 32
      %43 = vsyncadd [#allocation4], %s42
      %s45 = sshll.u32 [#allocation5], 4
      %s46 = int_to_ptr.vmem [resolvable:$true] %s45
      %48 = dma.vmem_to_hbm [thread:$0]  %s46, 32, %s1, [#allocation4]
    $region13: #{tpu_custom_call.1} parent=1 // pred_fallthru
      _
    // Predicated region
    $region14: #{tpu_custom_call.1} parent=1 // pred_check
      _
    $region15: #{tpu_custom_call.1} parent=1 // pred_check_branch
      %50 = sbr.rel (0) target = $region17
    $region16: #{tpu_custom_call.1} parent=1 // pred_region
      %51 = dma.done [#allocation4], 32
    $region17: #{tpu_custom_call.1} parent=1 // pred_fallthru
      _
    %52 = vsyncpa [#allocation3], 1
    %53 = vsyncpa [#allocation4], 1

</llo_original>
